<compile_context>
chip_gen: v5e
topology: v5e:2x2
jax: 0.10.0
libtpu: 0.0.40
codegen_flags: <defaults>
</compile_context>

<pallas_src>
import functools
import math

import jax
import jax.numpy as jnp
from jax import lax
from jax.experimental import pallas as pl
from jax.experimental.pallas import tpu as pltpu


# ------------------------------- in-kernel helpers -----------------------------------

def _erf(x):
    """Abramowitz & Stegun 7.1.26 rational erf approximation (|err| < 1.5e-7).

    Sign handling uses bit ops (pltpu.bitcast): the magnitude term is >= 0, so OR-ing
    the original sign bit back in replaces jnp.sign + a final multiply.  exp and the
    Newton-refined reciprocal ride the otherwise-idle EUP slot.
    """
    a1, a2, a3, a4, a5 = 0.254829592, -0.284496736, 1.421413741, -1.453152027, 1.061405429
    p = 0.3275911
    sign_mask = jnp.int32(-2147483648)                      # 0x80000000
    sign_bits = pltpu.bitcast(x, jnp.int32) & sign_mask
    ax = jnp.abs(x)
    d = 1.0 + p * ax
    t = pl.reciprocal(d, approx=True)                       # EUP
    t = t * (2.0 - d * t)                                   # one Newton step -> f32 1/d
    poly = t * (a1 + t * (a2 + t * (a3 + t * (a4 + t * a5))))
    mag = 1.0 - poly * jnp.exp(-ax * ax)                    # >= 0 for ax >= 0
    return pltpu.bitcast(pltpu.bitcast(mag, jnp.int32) | sign_bits, jnp.float32)


def _gelu_exact(x):
    # PyTorch nn.GELU() default: 0.5 * x * (1 + erf(x / sqrt(2)))
    return 0.5 * x * (1.0 + _erf(x * (1.0 / math.sqrt(2.0))))


# ----------------------------------- kernels ------------------------------------------

def _ds_kernel_lane_aligned(xp_ref, w_ref, b_ref, o_ref, *, eps, inv_c, c_in, mm_dtype):
    """Fast path (C_in % 128 == 0): per-pixel LN stats from lane-aligned slices,
    two-pass (centered) variance, single bf16 MXU matmul.  No indicator matmuls."""
    x = xp_ref[...].astype(jnp.float32)              # (tm, K = 4*C_in), (kh,kw,c)-major
    chunks = []
    for p_idx in range(4):                           # statically unrolled
        xk = x[:, p_idx * c_in:(p_idx + 1) * c_in]   # lane-aligned static slice
        u = jnp.sum(xk, axis=-1, keepdims=True) * inv_c
        xc = xk - u                                  # center first (robust variance)
        var = jnp.sum(xc * xc, axis=-1, keepdims=True) * inv_c
        r = lax.rsqrt(var + eps)                     # EUP
        chunks.append(xc * r)                        # VPU lane-broadcast of (tm,1)
    xs = jnp.concatenate(chunks, axis=-1).astype(mm_dtype)
    y = jnp.dot(xs, w_ref[...], preferred_element_type=jnp.float32) + b_ref[...]
    o_ref[...] = _gelu_exact(y).astype(o_ref.dtype)


def _ds_kernel_indicator(xp_ref, sel_ref, selt_ref, w_ref, wsum_ref, b_ref, o_ref,
                         *, eps, inv_c, mm_dtype):
    """Fallback for arbitrary C_in: per-pixel LN stats / broadcast via tiny indicator
    matmuls (keeps everything lane-dense); main matmul in mm_dtype, stats in f32."""
    x = xp_ref[...].astype(jnp.float32)                              # (tm, K)
    sel = sel_ref[...]                                               # (K, 4) f32
    s1 = jnp.dot(x, sel, preferred_element_type=jnp.float32)         # (tm, 4)
    s2 = jnp.dot(x * x, sel, preferred_element_type=jnp.float32)     # (tm, 4)
    u = s1 * inv_c
    var = s2 * inv_c - u * u
    r = lax.rsqrt(var + eps)                                         # (tm, 4)
    rb = jnp.dot(r, selt_ref[...], preferred_element_type=jnp.float32)   # (tm, K)
    xs = (x * rb).astype(mm_dtype)
    y = jnp.dot(xs, w_ref[...], preferred_element_type=jnp.float32)
    y = y - jnp.dot(u * r, wsum_ref[...], preferred_element_type=jnp.float32)
    y = y + b_ref[...]
    o_ref[...] = _gelu_exact(y).astype(o_ref.dtype)


# ----------------------------------- wrapper ------------------------------------------

def _vmem_capacity_bytes():
    try:
        return int(pltpu.get_tpu_info().vmem_capacity_bytes)
    except Exception:
        return 64 * 2**20       # conservative fallback: v7x per-TensorCore VMEM


def _pick_tm(M, per_row_bytes, const_bytes, vmem_limit_bytes):
    """Largest multiple-of-8 row tile fitting the VMEM budget with >=4 grid steps
    (pipeline steady state + both v7x TCs), preferring exact divisors of M (no pad
    copy) and an even step count."""
    budget = max(vmem_limit_bytes - const_bytes - (2 << 20), 1 << 19)
    cap = max(8, min(1024, (budget // per_row_bytes) // 8 * 8))
    min_steps = 4 if M >= 32 else max(1, M // 8)
    best_key, best_tm = None, 8
    for t in range(8, cap + 1, 8):
        steps = pl.cdiv(M, t)
        if steps < min_steps:
            continue
        pad = steps * t - M
        key = (pad == 0, steps % 2 == 0, t)
        if best_key is None or key > best_key:
            best_key, best_tm = key, t
    return best_tm


def downsample_layer(x, ln_gamma, ln_beta, conv_w, conv_b, *, eps=1e-6,
                     matmul_dtype=jnp.bfloat16, in_format="NCHW", out_format="NCHW",
                     tm=None):
    """DownsampleLayer forward: channels_first LayerNorm -> Conv2d(k=2,s=2) -> GELU.

    x: (B, C_in, H, W) for in_format="NCHW" (PyTorch module contract), or
       (B, H, W, C_in) for in_format="NHWC" (skips one wrapper-side layout copy).
    matmul_dtype: operand dtype of the main MXU matmul (accumulation is always f32);
       bf16 (default) runs the MXU at full rate, float32 matches the reference ~1e-4.
    """
    f32 = jnp.float32
    if in_format == "NCHW":
        B, C_in, H, W = x.shape
    elif in_format == "NHWC":
        B, H, W, C_in = x.shape
    else:
        raise ValueError(f"unknown in_format {in_format!r}")
    C_out = conv_w.shape[0]
    assert conv_w.shape == (C_out, C_in, 2, 2)
    assert H % 2 == 0 and W % 2 == 0
    Ho, Wo = H // 2, W // 2
    M = B * Ho * Wo
    K = 4 * C_in

    # --- patch extraction: one fused XLA layout copy -> (M, K), K ordered (kh, kw, c) --
    # TODO(synk): for NCHW callers this copy (and the final NCHW transpose) is an extra
    # HBM round-trip; it can only be removed by going channels-last end to end
    # (in_format/out_format="NHWC") or by an in-kernel relayout over a 3-D grid.
    if in_format == "NCHW":
        xp = x.reshape(B, C_in, Ho, 2, Wo, 2)
        xp = jnp.transpose(xp, (0, 2, 4, 3, 5, 1)).reshape(M, K)
    else:
        xp = x.reshape(B, Ho, 2, Wo, 2, C_in)
        xp = jnp.transpose(xp, (0, 1, 3, 2, 4, 5)).reshape(M, K)
    xp = xp.astype(f32)     # keep f32: one-pass variance on bf16 inputs is too lossy

    # --- fold LayerNorm affine into conv weight / bias (exact identity) ----------------
    w = jnp.transpose(conv_w, (2, 3, 1, 0)).reshape(K, C_out).astype(f32)   # (kh,kw,c)->co
    gamma_k = jnp.tile(ln_gamma.astype(f32), 4)                             # (K,)
    beta_k = jnp.tile(ln_beta.astype(f32), 4)                               # (K,)
    w_fold = w * gamma_k[:, None]                                           # (K, C_out) f32
    bias = (conv_b.astype(f32) + beta_k @ w).reshape(1, C_out)              # (1, C_out) f32
    w_mm = w_fold.astype(matmul_dtype)                                      # MXU operand

    lane_aligned = (C_in % 128 == 0)
    if not lane_aligned:
        sel = jnp.repeat(jnp.eye(4, dtype=f32), C_in, axis=0)               # (K, 4)
        selt = sel.T                                                        # (4, K)
        wsum = selt @ w_fold                                                # (4, C_out) f32

    # --- generation-aware tiling / VMEM budget ------------------------------------------
    w_itemsize = jnp.dtype(matmul_dtype).itemsize
    const_bytes = K * C_out * w_itemsize + C_out * 4
    if not lane_aligned:
        const_bytes += (K * 4 + 4 * K + 4 * C_out) * 4
    per_row_bytes = 2 * 4 * (K + C_out)           # double-buffered f32 in/out tile rows

    cap = _vmem_capacity_bytes()
    cap_limit = max(8 << 20, min(cap - (16 << 20), int(0.625 * cap)))
    if tm is None:
        tm = _pick_tm(M, per_row_bytes, 2 * const_bytes, cap_limit)
    assert tm % 8 == 0 and tm >= 8
    n_steps = pl.cdiv(M, tm)
    Mp = n_steps * tm
    if Mp != M:
        xp = jnp.pad(xp, ((0, Mp - M), (0, 0)))   # zero rows -> finite LN/GELU, sliced off

    # Always set the scoped-VMEM ask explicitly (v5e default is only 16 MiB), with a
    # per-generation cap so we never ask for more than the chip can comfortably give.
    need = per_row_bytes * tm + 2 * const_bytes + (2 << 20)
    vmem_limit = int(min(cap_limit, max(int(1.25 * need), 32 << 20)))

    use_single_buffer_consts = const_bytes > (256 << 10)

    def make_call(single_buffer_consts):
        def cspec(shape):
            if single_buffer_consts:
                return pl.BlockSpec(shape, lambda i: (0, 0),
                                    pipeline_mode=pl.Buffered(1))
            return pl.BlockSpec(shape, lambda i: (0, 0))

        x_spec = pl.BlockSpec((tm, K), lambda i: (i, 0))
        out_spec = pl.BlockSpec((tm, C_out), lambda i: (i, 0))
        if lane_aligned:
            kern = functools.partial(_ds_kernel_lane_aligned, eps=eps,
                                     inv_c=1.0 / C_in, c_in=C_in, mm_dtype=matmul_dtype)
            in_specs = [x_spec, cspec((K, C_out)), cspec((1, C_out))]
            ops = (xp, w_mm, bias)
        else:
            kern = functools.partial(_ds_kernel_indicator, eps=eps,
                                     inv_c=1.0 / C_in, mm_dtype=matmul_dtype)
            in_specs = [x_spec, cspec((K, 4)), cspec((4, K)), cspec((K, C_out)),
                        cspec((4, C_out)), cspec((1, C_out))]
            ops = (xp, sel, selt, w_mm, wsum, bias)

        return pl.pallas_call(
            kern,
            out_shape=jax.ShapeDtypeStruct((Mp, C_out), jnp.float32),
            grid_spec=pltpu.PrefetchScalarGridSpec(
                num_scalar_prefetch=0,
                grid=(Mp // tm,),
                in_specs=in_specs,
                out_specs=out_spec,
            ),
            compiler_params=pltpu.CompilerParams(
                dimension_semantics=("parallel",),
                vmem_limit_bytes=vmem_limit),
        )(*ops)

    if use_single_buffer_consts:
        try:
            out_flat = make_call(True)
        except Exception:
            # This jax/Mosaic version rejects pl.Buffered(1): fall back to default
            # double-buffering of the constant operands.
            out_flat = make_call(False)
    else:
        out_flat = make_call(False)

    out = out_flat[:M].reshape(B, Ho, Wo, C_out)
    if out_format == "NHWC":
        return out
    if out_format == "NCHW":
        # Module contract; one extra XLA layout copy.  Prefer out_format="NHWC" when the
        # surrounding model is channels-last (saves a full HBM pass over the output).
        return jnp.transpose(out, (0, 3, 1, 2))
    raise ValueError(f"unknown out_format {out_format!r}")


# ---------------------------------- reference ------------------------------------------

def _reference(x, ln_gamma, ln_beta, conv_w, conv_b, eps=1e-6):
    # Pure-JAX mirror of the PyTorch module (channels_first LN -> Conv2d k=2 s=2 -> GELU).
    u = jnp.mean(x, axis=1, keepdims=True)
    s = jnp.mean((x - u) ** 2, axis=1, keepdims=True)
    xn = (x - u) / jnp.sqrt(s + eps)
    xn = ln_gamma[None, :, None, None] * xn + ln_beta[None, :, None, None]
    y = lax.conv_general_dilated(xn, conv_w, window_strides=(2, 2), padding="VALID",
                                 dimension_numbers=("NCHW", "OIHW", "NCHW"))
    y = y + conv_b[None, :, None, None]
    return jax.nn.gelu(y, approximate=False)


if __name__ == "__main__":
    keys = jax.random.split(jax.random.PRNGKey(0), 10)

    # ---- test 1: module-spec small shapes (NCHW contract), C_in=4 -> indicator path ----
    B, C_in, H, W, C_out = 2, 4, 16, 16, 8
    x = jax.random.normal(keys[0], (B, C_in, H, W), dtype=jnp.float32)
    ln_gamma = 1.0 + 0.1 * jax.random.normal(keys[1], (C_in,), dtype=jnp.float32)
    ln_beta = 0.05 * jax.random.normal(keys[2], (C_in,), dtype=jnp.float32)
    conv_w = 0.1 * jax.random.normal(keys[3], (C_out, C_in, 2, 2), dtype=jnp.float32)
    conv_b = 0.1 * jax.random.normal(keys[4], (C_out,), dtype=jnp.float32)

    ref = _reference(x, ln_gamma, ln_beta, conv_w, conv_b)

    out = jax.block_until_ready(downsample_layer(x, ln_gamma, ln_beta, conv_w, conv_b))
    assert out.shape == (B, C_out, H // 2, W // 2)
    err = float(jnp.max(jnp.abs(out - ref)))
    assert err < 3e-2, f"bf16-operand path: max abs err {err}"   # bf16 MXU operands

    out_f32 = jax.block_until_ready(
        downsample_layer(x, ln_gamma, ln_beta, conv_w, conv_b, matmul_dtype=jnp.float32))
    err_f32 = float(jnp.max(jnp.abs(out_f32 - ref)))
    assert err_f32 < 2e-4, f"f32-operand path: max abs err {err_f32}"

    # ---- test 2: lane-aligned channel count (C_in % 128 == 0) -> sliced-stats path -----
    B2, C2_in, H2, W2, C2_out = 1, 128, 8, 8, 32
    x2 = jax.random.normal(keys[5], (B2, C2_in, H2, W2), dtype=jnp.float32)
    g2 = 1.0 + 0.1 * jax.random.normal(keys[6], (C2_in,), dtype=jnp.float32)
    be2 = 0.05 * jax.random.normal(keys[7], (C2_in,), dtype=jnp.float32)
    w2 = 0.05 * jax.random.normal(keys[8], (C2_out, C2_in, 2, 2), dtype=jnp.float32)
    cb2 = 0.1 * jax.random.normal(keys[9], (C2_out,), dtype=jnp.float32)

    ref2 = _reference(x2, g2, be2, w2, cb2)
    out2 = jax.block_until_ready(downsample_layer(x2, g2, be2, w2, cb2))
    assert out2.shape == (B2, C2_out, H2 // 2, W2 // 2)
    err2 = float(jnp.max(jnp.abs(out2 - ref2)))
    assert err2 < 5e-2, f"lane-aligned bf16 path: max abs err {err2}"

    out2_f32 = jax.block_until_ready(
        downsample_layer(x2, g2, be2, w2, cb2, matmul_dtype=jnp.float32))
    err2_f32 = float(jnp.max(jnp.abs(out2_f32 - ref2)))
    assert err2_f32 < 1e-3, f"lane-aligned f32 path: max abs err {err2_f32}"

    print("KERNEL_OK")
</pallas_src>

<mosaic_0001>
module attributes {stable_mosaic.version = 11 : i64} {
  func.func @_ds_kernel_indicator(%arg0: i32, %arg1: memref<32x16xf32, #tpu.memory_space<vmem>>, %arg2: memref<16x4xf32, #tpu.memory_space<vmem>>, %arg3: memref<4x16xf32, #tpu.memory_space<vmem>>, %arg4: memref<16x8xbf16, #tpu.memory_space<vmem>>, %arg5: memref<4x8xf32, #tpu.memory_space<vmem>>, %arg6: memref<1x8xf32, #tpu.memory_space<vmem>>, %arg7: memref<32x8xf32, #tpu.memory_space<vmem>>) attributes {dimension_semantics = [#tpu.dimension_semantics<parallel>], iteration_bounds = array<i64: 4>, scalar_prefetch = 0 : i64, scratch_operands = 0 : i64, tpu.core_type = #tpu.core_type<tc>, window_params = [{transform_indices = @transform_0, window_bounds = array<i64: 32, 16>}, {pipeline_mode = #tpu.pipeline_mode<synchronous>, transform_indices = @transform_1, window_bounds = array<i64: 16, 4>}, {pipeline_mode = #tpu.pipeline_mode<synchronous>, transform_indices = @transform_2, window_bounds = array<i64: 4, 16>}, {pipeline_mode = #tpu.pipeline_mode<synchronous>, transform_indices = @transform_3, window_bounds = array<i64: 16, 8>}, {pipeline_mode = #tpu.pipeline_mode<synchronous>, transform_indices = @transform_4, window_bounds = array<i64: 4, 8>}, {pipeline_mode = #tpu.pipeline_mode<synchronous>, transform_indices = @transform_5, window_bounds = array<i64: 1, 8>}, {transform_indices = @transform_6, window_bounds = array<i64: 32, 8>}]} {
    %c0 = arith.constant 0 : index
    %c0_0 = arith.constant 0 : index
    %0 = vector.load %arg1[%c0, %c0_0] : memref<32x16xf32, #tpu.memory_space<vmem>>, vector<32x16xf32>
    %c0_1 = arith.constant 0 : index
    %c0_2 = arith.constant 0 : index
    %1 = vector.load %arg2[%c0_1, %c0_2] : memref<16x4xf32, #tpu.memory_space<vmem>>, vector<16x4xf32>
    %cst = arith.constant dense<0.000000e+00> : vector<32x4xf32>
    %2 = tpu.matmul %0, %1, %cst {dimension_numbers = #tpu.dot_dimension_numbers<[1], [0], [0], [1], [0, 0, 1, 1], [], []>} : vector<32x16xf32>, vector<16x4xf32>, vector<32x4xf32> -> vector<32x4xf32>
    %3 = arith.mulf %0, %0 : vector<32x16xf32>
    %cst_3 = arith.constant dense<0.000000e+00> : vector<32x4xf32>
    %4 = tpu.matmul %3, %1, %cst_3 {dimension_numbers = #tpu.dot_dimension_numbers<[1], [0], [0], [1], [0, 0, 1, 1], [], []>} : vector<32x16xf32>, vector<16x4xf32>, vector<32x4xf32> -> vector<32x4xf32>
    %cst_4 = arith.constant 2.500000e-01 : f32
    %5 = vector.broadcast %cst_4 : f32 to vector<32x4xf32>
    %6 = arith.mulf %2, %5 : vector<32x4xf32>
    %cst_5 = arith.constant 2.500000e-01 : f32
    %7 = vector.broadcast %cst_5 : f32 to vector<32x4xf32>
    %8 = arith.mulf %4, %7 : vector<32x4xf32>
    %9 = arith.mulf %6, %6 : vector<32x4xf32>
    %10 = arith.subf %8, %9 : vector<32x4xf32>
    %cst_6 = arith.constant 9.99999997E-7 : f32
    %11 = vector.broadcast %cst_6 : f32 to vector<32x4xf32>
    %12 = arith.addf %10, %11 : vector<32x4xf32>
    %13 = math.rsqrt %12 : vector<32x4xf32>
    %c0_7 = arith.constant 0 : index
    %c0_8 = arith.constant 0 : index
    %14 = vector.load %arg3[%c0_7, %c0_8] : memref<4x16xf32, #tpu.memory_space<vmem>>, vector<4x16xf32>
    %cst_9 = arith.constant dense<0.000000e+00> : vector<32x16xf32>
    %15 = tpu.matmul %13, %14, %cst_9 {dimension_numbers = #tpu.dot_dimension_numbers<[1], [0], [0], [1], [0, 0, 1, 1], [], []>} : vector<32x4xf32>, vector<4x16xf32>, vector<32x16xf32> -> vector<32x16xf32>
    %16 = arith.mulf %0, %15 : vector<32x16xf32>
    %17 = arith.truncf %16 : vector<32x16xf32> to vector<32x16xbf16>
    %c0_10 = arith.constant 0 : index
    %c0_11 = arith.constant 0 : index
    %18 = vector.load %arg4[%c0_10, %c0_11] : memref<16x8xbf16, #tpu.memory_space<vmem>>, vector<16x8xbf16>
    %cst_12 = arith.constant dense<0.000000e+00> : vector<32x8xf32>
    %19 = tpu.matmul %17, %18, %cst_12 {dimension_numbers = #tpu.dot_dimension_numbers<[1], [0], [0], [1], [0, 0, 1, 1], [], []>} : vector<32x16xbf16>, vector<16x8xbf16>, vector<32x8xf32> -> vector<32x8xf32>
    %20 = arith.mulf %6, %13 : vector<32x4xf32>
    %c0_13 = arith.constant 0 : index
    %c0_14 = arith.constant 0 : index
    %21 = vector.load %arg5[%c0_13, %c0_14] : memref<4x8xf32, #tpu.memory_space<vmem>>, vector<4x8xf32>
    %cst_15 = arith.constant dense<0.000000e+00> : vector<32x8xf32>
    %22 = tpu.matmul %20, %21, %cst_15 {dimension_numbers = #tpu.dot_dimension_numbers<[1], [0], [0], [1], [0, 0, 1, 1], [], []>} : vector<32x4xf32>, vector<4x8xf32>, vector<32x8xf32> -> vector<32x8xf32>
    %23 = arith.subf %19, %22 : vector<32x8xf32>
    %c0_16 = arith.constant 0 : index
    %c0_17 = arith.constant 0 : index
    %24 = vector.load %arg6[%c0_16, %c0_17] : memref<1x8xf32, #tpu.memory_space<vmem>>, vector<1x8xf32>
    %25 = vector.broadcast %24 : vector<1x8xf32> to vector<32x8xf32>
    %26 = arith.addf %23, %25 : vector<32x8xf32>
    %cst_18 = arith.constant 5.000000e-01 : f32
    %27 = vector.broadcast %cst_18 : f32 to vector<32x8xf32>
    %28 = arith.mulf %27, %26 : vector<32x8xf32>
    %cst_19 = arith.constant 0.707106769 : f32
    %29 = vector.broadcast %cst_19 : f32 to vector<32x8xf32>
    %30 = arith.mulf %26, %29 : vector<32x8xf32>
    %31 = tpu.bitcast %30 : vector<32x8xf32> -> vector<32x8xi32>
    %c-2147483648_i32 = arith.constant -2147483648 : i32
    %32 = vector.broadcast %c-2147483648_i32 : i32 to vector<32x8xi32>
    %33 = arith.andi %31, %32 : vector<32x8xi32>
    %34 = math.absf %30 : vector<32x8xf32>
    %cst_20 = arith.constant 0.327591091 : f32
    %35 = vector.broadcast %cst_20 : f32 to vector<32x8xf32>
    %36 = arith.mulf %35, %34 : vector<32x8xf32>
    %cst_21 = arith.constant 1.000000e+00 : f32
    %37 = vector.broadcast %cst_21 : f32 to vector<32x8xf32>
    %38 = arith.addf %37, %36 : vector<32x8xf32>
    %39 = tpu.reciprocal %38 {approx = true} : vector<32x8xf32> -> vector<32x8xf32>
    %40 = arith.mulf %38, %39 : vector<32x8xf32>
    %cst_22 = arith.constant 2.000000e+00 : f32
    %41 = vector.broadcast %cst_22 : f32 to vector<32x8xf32>
    %42 = arith.subf %41, %40 : vector<32x8xf32>
    %43 = arith.mulf %39, %42 : vector<32x8xf32>
    %cst_23 = arith.constant 1.06140542 : f32
    %44 = vector.broadcast %cst_23 : f32 to vector<32x8xf32>
    %45 = arith.mulf %43, %44 : vector<32x8xf32>
    %cst_24 = arith.constant -1.45315206 : f32
    %46 = vector.broadcast %cst_24 : f32 to vector<32x8xf32>
    %47 = arith.addf %46, %45 : vector<32x8xf32>
    %48 = arith.mulf %43, %47 : vector<32x8xf32>
    %cst_25 = arith.constant 1.42141378 : f32
    %49 = vector.broadcast %cst_25 : f32 to vector<32x8xf32>
    %50 = arith.addf %49, %48 : vector<32x8xf32>
    %51 = arith.mulf %43, %50 : vector<32x8xf32>
    %cst_26 = arith.constant -0.284496725 : f32
    %52 = vector.broadcast %cst_26 : f32 to vector<32x8xf32>
    %53 = arith.addf %52, %51 : vector<32x8xf32>
    %54 = arith.mulf %43, %53 : vector<32x8xf32>
    %cst_27 = arith.constant 0.254829586 : f32
    %55 = vector.broadcast %cst_27 : f32 to vector<32x8xf32>
    %56 = arith.addf %55, %54 : vector<32x8xf32>
    %57 = arith.mulf %43, %56 : vector<32x8xf32>
    %cst_28 = arith.constant 0.000000e+00 : f32
    %58 = vector.broadcast %cst_28 : f32 to vector<32x8xf32>
    %59 = arith.subf %58, %34 : vector<32x8xf32>
    %60 = arith.mulf %59, %34 : vector<32x8xf32>
    %61 = math.exp %60 : vector<32x8xf32>
    %62 = arith.mulf %57, %61 : vector<32x8xf32>
    %cst_29 = arith.constant 1.000000e+00 : f32
    %63 = vector.broadcast %cst_29 : f32 to vector<32x8xf32>
    %64 = arith.subf %63, %62 : vector<32x8xf32>
    %65 = tpu.bitcast %64 : vector<32x8xf32> -> vector<32x8xi32>
    %66 = arith.ori %65, %33 : vector<32x8xi32>
    %67 = tpu.bitcast %66 : vector<32x8xi32> -> vector<32x8xf32>
    %cst_30 = arith.constant 1.000000e+00 : f32
    %68 = vector.broadcast %cst_30 : f32 to vector<32x8xf32>
    %69 = arith.addf %68, %67 : vector<32x8xf32>
    %70 = arith.mulf %28, %69 : vector<32x8xf32>
    %c0_31 = arith.constant 0 : index
    %c0_32 = arith.constant 0 : index
    %71 = vector.load %arg7[%c0_31, %c0_32] : memref<32x8xf32, #tpu.memory_space<vmem>>, vector<32x8xf32>
    tpu.vector_store %arg7[%c0_31, %c0_32], %70 {strides = array<i32>} : memref<32x8xf32, #tpu.memory_space<vmem>>, vector<32x8xf32>,
    return
  }
  func.func @transform_0(%arg0: i32) -> (i32, i32) {
    %c0_i32 = arith.constant 0 : i32
    %c0_i32_0 = arith.constant 0 : i32
    return %arg0, %c0_i32 : i32, i32
  }
  func.func @transform_1(%arg0: i32) -> (i32, i32) {
    %c0_i32 = arith.constant 0 : i32
    %c0_i32_0 = arith.constant 0 : i32
    %c0_i32_1 = arith.constant 0 : i32
    return %c0_i32, %c0_i32_0 : i32, i32
  }
  func.func @transform_2(%arg0: i32) -> (i32, i32) {
    %c0_i32 = arith.constant 0 : i32
    %c0_i32_0 = arith.constant 0 : i32
    %c0_i32_1 = arith.constant 0 : i32
    return %c0_i32, %c0_i32_0 : i32, i32
  }
  func.func @transform_3(%arg0: i32) -> (i32, i32) {
    %c0_i32 = arith.constant 0 : i32
    %c0_i32_0 = arith.constant 0 : i32
    %c0_i32_1 = arith.constant 0 : i32
    return %c0_i32, %c0_i32_0 : i32, i32
  }
  func.func @transform_4(%arg0: i32) -> (i32, i32) {
    %c0_i32 = arith.constant 0 : i32
    %c0_i32_0 = arith.constant 0 : i32
    %c0_i32_1 = arith.constant 0 : i32
    return %c0_i32, %c0_i32_0 : i32, i32
  }
  func.func @transform_5(%arg0: i32) -> (i32, i32) {
    %c0_i32 = arith.constant 0 : i32
    %c0_i32_0 = arith.constant 0 : i32
    %c0_i32_1 = arith.constant 0 : i32
    return %c0_i32, %c0_i32_0 : i32, i32
  }
  func.func @transform_6(%arg0: i32) -> (i32, i32) {
    %c0_i32 = arith.constant 0 : i32
    %c0_i32_0 = arith.constant 0 : i32
    return %arg0, %c0_i32 : i32, i32
  }
}

</mosaic_0001>

<llo_original>
// kernel: tpu_custom_call.1
$region0: #{tpu_custom_call.1}
  #allocation0 [shape = 'u32[]', space=smem, size = 0x4, offset = 0x4, fixed_abs, tag = 'smem constant byte address 0x4 - core index']
  #allocation1 [shape = 'u32[72,128]{1,0:T(1,128)}', space=vmem, size = 0x9000, scoped, tag = 'internal scratch']
  %s0 = inlined_call_operand.vmem [shape: f32[128,16], index: 0, kind: input, shape index: {}]
  %s1 = inlined_call_operand.vmem [shape: f32[16,4], index: 1, kind: input, shape index: {}]
  %s2 = inlined_call_operand.vmem [shape: f32[4,16], index: 2, kind: input, shape index: {}]
  %s3 = inlined_call_operand.vmem [shape: bf16[16,8], index: 3, kind: input, shape index: {}]
  %s4 = inlined_call_operand.vmem [shape: f32[4,8], index: 4, kind: input, shape index: {}]
  %s5 = inlined_call_operand.vmem [shape: f32[1,8], index: 5, kind: input, shape index: {}]
  %s6 = inlined_call_operand.vmem [shape: f32[128,8], index: 6, kind: output, shape index: {}]
  %s7 = sld [smem:[#allocation0]]
  $region57: #{tpu_custom_call.1} parent=0
    _
  %s9 = ssub.s32 1, %s7
  %s10 = scalar_select 0, %s9, %s7
  loop: start=0, step=1, limit=6
  $region2: #{tpu_custom_call.1} parent=0 // loop_pre_header
    _
  $region3: #{tpu_custom_call.1} parent=0 // loop_header
    %s12 = sphi 0, %s16
    %p13 = scmp.ge.s32.totalorder %s12, 6
    %s22 = sphi 0, %s24
    %s25 = sphi 0, %s22
    %s26 = sphi 0, %s25
    %s42 = sphi 0, %s26
    %s46 = sphi 0, %s46
    %s48 = sphi 0, %s46
    %s49 = sphi 0, %s48
    %s63 = sphi 0, %s49
    %s67 = sphi 0, %s67
    %s69 = sphi 0, %s67
    %s70 = sphi 0, %s69
    %s84 = sphi 0, %s70
    %s88 = sphi 0, %s88
    %s90 = sphi 0, %s88
    %s91 = sphi 0, %s90
    %s105 = sphi 0, %s91
    %s109 = sphi 0, %s109
    %s111 = sphi 0, %s109
    %s112 = sphi 0, %s111
    %s126 = sphi 0, %s112
    %s130 = sphi 0, %s130
    %s132 = sphi 0, %s130
    %s133 = sphi 0, %s132
    %s147 = sphi 0, %s133
    %s153 = sphi 0, %s155
    %s156 = sphi 0, %s153
    %s157 = sphi 0, %s156
    %s173 = sphi 0, %s157
  $region4: #{tpu_custom_call.1} parent=0 // loop_header_branch
    %15 = sbr.rel (%p13) target = $region8
  $region5: #{tpu_custom_call.1} parent=0 // loop_body
    %s17 = ssub.s32 %s12, 1
    %s18 = ssub.s32 %s12, 2
    %s19 = sadd.s32 %s12, 1
    %s20 = ssub.s32 %s12, %s19
    %p21 = scmp.eq.s32.totalorder %s20, 0
    %s23 = sadd.s32 %s22, 1
    %s24 = scalar_select %p21, %s22, %s23
    %p27 = pneg %p21
    %p28 = scmp.eq.s32.totalorder %s12, 3
    %p29 = por %p27, %p28
    %p30 = scmp.ne.s32.totalorder %s22, %s25
    %p31 = scmp.eq.s32.totalorder %s12, 0
    %p32 = por %p30, %p31
    %p33 = scmp.ne.s32.totalorder %s22, %s25
    %p34 = scmp.eq.s32.totalorder %s17, 3
    %p35 = por %p33, %p34
    %p36 = scmp.ne.s32.totalorder %s25, %s26
    %p37 = scmp.eq.s32.totalorder %s17, 0
    %p38 = por %p36, %p37
    %p39 = scmp.ne.s32.totalorder %s25, %s26
    %p40 = scmp.eq.s32.totalorder %s18, 3
    %p41 = por %p39, %p40
    %p43 = scmp.ne.s32.totalorder %s26, %s42
    %p44 = scmp.eq.s32.totalorder %s18, 0
    %p45 = por %p43, %p44
    %s47 = sadd.s32 %s46, 1
    %p50 = scmp.eq.s32.totalorder %s12, 3
    %p51 = scmp.ne.s32.totalorder %s46, %s48
    %p52 = scmp.eq.s32.totalorder %s12, 0
    %p53 = por %p51, %p52
    %p54 = scmp.ne.s32.totalorder %s46, %s48
    %p55 = scmp.eq.s32.totalorder %s17, 3
    %p56 = por %p54, %p55
    %p57 = scmp.ne.s32.totalorder %s48, %s49
    %p58 = scmp.eq.s32.totalorder %s17, 0
    %p59 = por %p57, %p58
    %p60 = scmp.ne.s32.totalorder %s48, %s49
    %p61 = scmp.eq.s32.totalorder %s18, 3
    %p62 = por %p60, %p61
    %p64 = scmp.ne.s32.totalorder %s49, %s63
    %p65 = scmp.eq.s32.totalorder %s18, 0
    %p66 = por %p64, %p65
    %s68 = sadd.s32 %s67, 1
    %p71 = scmp.eq.s32.totalorder %s12, 3
    %p72 = scmp.ne.s32.totalorder %s67, %s69
    %p73 = scmp.eq.s32.totalorder %s12, 0
    %p74 = por %p72, %p73
    %p75 = scmp.ne.s32.totalorder %s67, %s69
    %p76 = scmp.eq.s32.totalorder %s17, 3
    %p77 = por %p75, %p76
    %p78 = scmp.ne.s32.totalorder %s69, %s70
    %p79 = scmp.eq.s32.totalorder %s17, 0
    %p80 = por %p78, %p79
    %p81 = scmp.ne.s32.totalorder %s69, %s70
    %p82 = scmp.eq.s32.totalorder %s18, 3
    %p83 = por %p81, %p82
    %p85 = scmp.ne.s32.totalorder %s70, %s84
    %p86 = scmp.eq.s32.totalorder %s18, 0
    %p87 = por %p85, %p86
    %s89 = sadd.s32 %s88, 1
    %p92 = scmp.eq.s32.totalorder %s12, 3
    %p93 = scmp.ne.s32.totalorder %s88, %s90
    %p94 = scmp.eq.s32.totalorder %s12, 0
    %p95 = por %p93, %p94
    %p96 = scmp.ne.s32.totalorder %s88, %s90
    %p97 = scmp.eq.s32.totalorder %s17, 3
    %p98 = por %p96, %p97
    %p99 = scmp.ne.s32.totalorder %s90, %s91
    %p100 = scmp.eq.s32.totalorder %s17, 0
    %p101 = por %p99, %p100
    %p102 = scmp.ne.s32.totalorder %s90, %s91
    %p103 = scmp.eq.s32.totalorder %s18, 3
    %p104 = por %p102, %p103
    %p106 = scmp.ne.s32.totalorder %s91, %s105
    %p107 = scmp.eq.s32.totalorder %s18, 0
    %p108 = por %p106, %p107
    %s110 = sadd.s32 %s109, 1
    %p113 = scmp.eq.s32.totalorder %s12, 3
    %p114 = scmp.ne.s32.totalorder %s109, %s111
    %p115 = scmp.eq.s32.totalorder %s12, 0
    %p116 = por %p114, %p115
    %p117 = scmp.ne.s32.totalorder %s109, %s111
    %p118 = scmp.eq.s32.totalorder %s17, 3
    %p119 = por %p117, %p118
    %p120 = scmp.ne.s32.totalorder %s111, %s112
    %p121 = scmp.eq.s32.totalorder %s17, 0
    %p122 = por %p120, %p121
    %p123 = scmp.ne.s32.totalorder %s111, %s112
    %p124 = scmp.eq.s32.totalorder %s18, 3
    %p125 = por %p123, %p124
    %p127 = scmp.ne.s32.totalorder %s112, %s126
    %p128 = scmp.eq.s32.totalorder %s18, 0
    %p129 = por %p127, %p128
    %s131 = sadd.s32 %s130, 1
    %p134 = scmp.eq.s32.totalorder %s12, 3
    %p135 = scmp.ne.s32.totalorder %s130, %s132
    %p136 = scmp.eq.s32.totalorder %s12, 0
    %p137 = por %p135, %p136
    %p138 = scmp.ne.s32.totalorder %s130, %s132
    %p139 = scmp.eq.s32.totalorder %s17, 3
    %p140 = por %p138, %p139
    %p141 = scmp.ne.s32.totalorder %s132, %s133
    %p142 = scmp.eq.s32.totalorder %s17, 0
    %p143 = por %p141, %p142
    %p144 = scmp.ne.s32.totalorder %s132, %s133
    %p145 = scmp.eq.s32.totalorder %s18, 3
    %p146 = por %p144, %p145
    %p148 = scmp.ne.s32.totalorder %s133, %s147
    %p149 = scmp.eq.s32.totalorder %s18, 0
    %p150 = por %p148, %p149
    %s151 = ssub.s32 %s12, %s19
    %p152 = scmp.eq.s32.totalorder %s151, 0
    %s154 = sadd.s32 %s153, 1
    %s155 = scalar_select %p152, %s153, %s154
    %p158 = pneg %p152
    %p159 = scmp.eq.s32.totalorder %s12, 3
    %p160 = por %p158, %p159
    %p161 = scmp.ne.s32.totalorder %s153, %s156
    %p162 = scmp.eq.s32.totalorder %s12, 0
    %p163 = por %p161, %p162
    %p164 = scmp.ne.s32.totalorder %s153, %s156
    %p165 = scmp.eq.s32.totalorder %s17, 3
    %p166 = por %p164, %p165
    %p167 = scmp.ne.s32.totalorder %s156, %s157
    %p168 = scmp.eq.s32.totalorder %s17, 0
    %p169 = por %p167, %p168
    %p170 = scmp.ne.s32.totalorder %s156, %s157
    %p171 = scmp.eq.s32.totalorder %s18, 3
    %p172 = por %p170, %p171
    %p174 = scmp.ne.s32.totalorder %s157, %s173
    %p175 = scmp.eq.s32.totalorder %s18, 0
    %p176 = por %p174, %p175
    %p177 = scmp.le.s32.totalorder 1, %s12
    %p178 = scmp.lt.s32.totalorder %s12, 5
    %p179 = pnand %p177, %p178
    %p180 = pneg %p179
    // Predicated region
    $region9: #{tpu_custom_call.1} parent=5 // pred_check
      _
    $region10: #{tpu_custom_call.1} parent=5 // pred_check_branch
      %182 = sbr.rel (%p179) target = $region12
    $region11: #{tpu_custom_call.1} parent=5 // pred_region
      %s183 = ssub.s32 %s12, 1
      // Predicated region
      $region13: #{tpu_custom_call.1} parent=11 // pred_check
        %p184 = pneg %p59
      $region14: #{tpu_custom_call.1} parent=11 // pred_check_branch
        %186 = sbr.rel (%p184) target = $region16
      $region15: #{tpu_custom_call.1} parent=11 // pred_region
        _
      $region16: #{tpu_custom_call.1} parent=11 // pred_fallthru
        _
      // Predicated region
      $region17: #{tpu_custom_call.1} parent=11 // pred_check
        %p187 = pneg %p80
      $region18: #{tpu_custom_call.1} parent=11 // pred_check_branch
        %189 = sbr.rel (%p187) target = $region20
      $region19: #{tpu_custom_call.1} parent=11 // pred_region
        _
      $region20: #{tpu_custom_call.1} parent=11 // pred_fallthru
        _
      // Predicated region
      $region21: #{tpu_custom_call.1} parent=11 // pred_check
        %p190 = pneg %p101
      $region22: #{tpu_custom_call.1} parent=11 // pred_check_branch
        %192 = sbr.rel (%p190) target = $region24
      $region23: #{tpu_custom_call.1} parent=11 // pred_region
        _
      $region24: #{tpu_custom_call.1} parent=11 // pred_fallthru
        _
      // Predicated region
      $region25: #{tpu_custom_call.1} parent=11 // pred_check
        %p193 = pneg %p122
      $region26: #{tpu_custom_call.1} parent=11 // pred_check_branch
        %195 = sbr.rel (%p193) target = $region28
      $region27: #{tpu_custom_call.1} parent=11 // pred_region
        _
      $region28: #{tpu_custom_call.1} parent=11 // pred_fallthru
        _
      // Predicated region
      $region29: #{tpu_custom_call.1} parent=11 // pred_check
        %p196 = pneg %p143
      $region30: #{tpu_custom_call.1} parent=11 // pred_check_branch
        %198 = sbr.rel (%p196) target = $region32
      $region31: #{tpu_custom_call.1} parent=11 // pred_region
        _
      $region32: #{tpu_custom_call.1} parent=11 // pred_fallthru
        _
    $region12: #{tpu_custom_call.1} parent=5 // pred_fallthru
      _
    %p199 = scmp.lt.s32.totalorder %s12, 4
    // Predicated region
    $region33: #{tpu_custom_call.1} parent=5 // pred_check
      %p200 = pneg %p199
    $region34: #{tpu_custom_call.1} parent=5 // pred_check_branch
      %202 = sbr.rel (%p200) target = $region36
    $region35: #{tpu_custom_call.1} parent=5 // pred_region
      // Predicated region
      $region37: #{tpu_custom_call.1} parent=35 // pred_check
        %p203 = pneg %p32
      $region38: #{tpu_custom_call.1} parent=35 // pred_check_branch
        %205 = sbr.rel (%p203) target = $region40
      $region39: #{tpu_custom_call.1} parent=35 // pred_region
        %s206 = smul.u32 4, %s12
        %p207 = scmp.lt.s32.totalorder %s206, 15
        %s208 = scalar_select %p207, %s206, 15
        %s209 = smul.addr %s208, 8
        %s210 = scalar_lea.vmem %s0, %s209
        %s211 = smul.u32 4, %s12
      $region40: #{tpu_custom_call.1} parent=35 // pred_fallthru
        _
    $region36: #{tpu_custom_call.1} parent=5 // pred_fallthru
      _
    %p212 = scmp.le.s32.totalorder 1, %s12
    %p213 = scmp.lt.s32.totalorder %s12, 5
    %p214 = pnand %p212, %p213
    %p215 = pneg %p214
    // Predicated region
    $region41: #{tpu_custom_call.1} parent=5 // pred_check
      _
    $region42: #{tpu_custom_call.1} parent=5 // pred_check_branch
      %217 = sbr.rel (%p214) target = $region44
    $region43: #{tpu_custom_call.1} parent=5 // pred_region
      %s218 = ssub.s32 %s12, 1
      %s219 = smul.u32 4, %s17
      %p220 = scmp.lt.s32.totalorder %s219, 15
      %s221 = scalar_select %p220, %s219, 15
      %s222 = smul.addr %s221, 8
      %s223 = scalar_lea.vmem %s0, %s222
      %p224 = pneg %p38
      %p225 = pneg %p35
      %p226 = pneg %p59
      %p227 = pneg %p56
      %p228 = pneg %p80
      %p229 = pneg %p77
      %p230 = pneg %p101
      %p231 = pneg %p98
      %p232 = pneg %p122
      %p233 = pneg %p119
      %p234 = pneg %p143
      %p235 = pneg %p140
      %p236 = pneg %p169
      %p237 = pneg %p166
      %s238 = smul.u32 4, %s17
      %p239 = scmp.lt.s32.totalorder %s238, 15
      %s240 = scalar_select %p239, %s238, 15
      %s241 = smul.addr %s240, 8
      %s242 = scalar_lea.vmem %s6, %s241
      %s243 = smul.u32 4, %s17
      %p244 = scmp.lt.s32.totalorder %s243, 15
      %s245 = scalar_select %p244, %s243, 15
      %s246 = smul.addr %s245, 8
      %s247 = scalar_lea.vmem %s0, %s246
      %s248 = smul.u32 4, %s17
      %s249 = smul.u32 4, %s17
      %p250 = scmp.lt.s32.totalorder %s249, 15
      %s251 = scalar_select %p250, %s249, 15
      %s252 = smul.addr %s251, 8
      %s253 = scalar_lea.vmem %s6, %s252
      %s254 = smul.u32 4, %s17
      %v256 = vld [vmem:[%s247] sm:$0xff]
      %v257 = vld [vmem:[%s247 + $0x8] sm:$0xff]
      %v258 = vld [vmem:[%s247 + $0x10] sm:$0xff]
      %v259 = vld [vmem:[%s247 + $0x18] sm:$0xff]
      %v260 = vld [vmem:[%s1] sm:$0xff]
      %v261 = vld [vmem:[%s1 + $0x8] sm:$0xff]
      %vm262 = vcmask 130048
      %v264 = vsel %vm262, %v256, 0
      %v267 = vsel %vm262, %v257, 0
      %v270 = vsel %vm262, %v258, 0
      %v273 = vsel %vm262, %v259, 0
      %275 = vmatpush.msra.mxu0 0.0
      %276 = vmatpush.msra.mxu0 0.0
      %277 = vmatpush.msra.mxu0 0.0
      %278 = vmatpush.msra.mxu0 0.0
      %279 = vmatpush.msra.mxu0 0.0
      %280 = vmatpush.msra.mxu0 0.0
      %281 = vmatpush.msra.mxu0 0.0
      %282 = vmatpush.msra.mxu0 0.0
      %283 = vmatpush.msra.mxu0 0.0
      %284 = vmatpush.msra.mxu0 0.0
      %285 = vmatpush.msra.mxu0 0.0
      %286 = vmatpush.msra.mxu0 0.0
      %287 = vmatpush.msra.mxu0 0.0
      %288 = vmatpush.msra.mxu0 0.0
      %289 = vmatpush.msra.mxu0 %v261
      %290 = vmatpush.msra.mxu0 %v260
      %291 = vmatmul.f32.gmra.mxu0 %v264
      %v292 = vpop.f32.mrf.mxu0
      %v293 = vadd.f32 0.0, %v292
      %294 = vmatmul.f32.gmra.mxu0 %v267
      %v295 = vpop.f32.mrf.mxu0
      %v296 = vadd.f32 0.0, %v295
      %297 = vmatmul.f32.gmra.mxu0 %v270
      %v298 = vpop.f32.mrf.mxu0
      %v299 = vadd.f32 0.0, %v298
      %300 = vmatmul.f32.gmra.mxu0 %v273
      %v301 = vpop.f32.mrf.mxu0
      %v302 = vadd.f32 0.0, %v301
      %303 = vdwg.mxu0
      %v304 = vmul.f32 %v256, %v256
      %v305 = vmul.f32 %v257, %v257
      %v306 = vmul.f32 %v258, %v258
      %v307 = vmul.f32 %v259, %v259
      %v309 = vsel %vm262, %v304, 0
      %v312 = vsel %vm262, %v305, 0
      %v315 = vsel %vm262, %v306, 0
      %v318 = vsel %vm262, %v307, 0
      %320 = vmatpush.msra.mxu0 0.0
      %321 = vmatpush.msra.mxu0 0.0
      %322 = vmatpush.msra.mxu0 0.0
      %323 = vmatpush.msra.mxu0 0.0
      %324 = vmatpush.msra.mxu0 0.0
      %325 = vmatpush.msra.mxu0 0.0
      %326 = vmatpush.msra.mxu0 0.0
      %327 = vmatpush.msra.mxu0 0.0
      %328 = vmatpush.msra.mxu0 0.0
      %329 = vmatpush.msra.mxu0 0.0
      %330 = vmatpush.msra.mxu0 0.0
      %331 = vmatpush.msra.mxu0 0.0
      %332 = vmatpush.msra.mxu0 0.0
      %333 = vmatpush.msra.mxu0 0.0
      %334 = vmatpush.msra.mxu0 %v261
      %335 = vmatpush.msra.mxu0 %v260
      %336 = vmatmul.f32.gmra.mxu0 %v309
      %v337 = vpop.f32.mrf.mxu0
      %v338 = vadd.f32 0.0, %v337
      %339 = vmatmul.f32.gmra.mxu0 %v312
      %v340 = vpop.f32.mrf.mxu0
      %v341 = vadd.f32 0.0, %v340
      %342 = vmatmul.f32.gmra.mxu0 %v315
      %v343 = vpop.f32.mrf.mxu0
      %v344 = vadd.f32 0.0, %v343
      %345 = vmatmul.f32.gmra.mxu0 %v318
      %v346 = vpop.f32.mrf.mxu0
      %v347 = vadd.f32 0.0, %v346
      %348 = vdwg.mxu0
      %v349 = vmul.f32 %v293, 0.25
      %v350 = vmul.f32 %v296, 0.25
      %v351 = vmul.f32 %v299, 0.25
      %v352 = vmul.f32 %v302, 0.25
      %v353 = vmul.f32 %v338, 0.25
      %v354 = vmul.f32 %v341, 0.25
      %v355 = vmul.f32 %v344, 0.25
      %v356 = vmul.f32 %v347, 0.25
      %v357 = vmul.f32 %v349, %v349
      %v358 = vmul.f32 %v350, %v350
      %v359 = vmul.f32 %v351, %v351
      %v360 = vmul.f32 %v352, %v352
      %v361 = vsub.f32 %v353, %v357
      %v362 = vsub.f32 %v354, %v358
      %v363 = vsub.f32 %v355, %v359
      %v364 = vsub.f32 %v356, %v360
      %v365 = vadd.f32 %v361, 1e-06
      %v366 = vadd.f32 %v362, 1e-06
      %v367 = vadd.f32 %v363, 1e-06
      %v368 = vadd.f32 %v364, 1e-06
      %v369 = vrsqrt.pop %v365
      %v370 = vmul.f32 %v369, %v365
      %v371 = vmul.f32 %v370, %v369
      %v372 = vmul.f32 0.5, %v371
      %v373 = vsub.f32 1.5, %v372
      %v374 = vmul.f32 %v369, %v373
      %vm375 = vweird.f32 %v365
      %vm376 = vweird.f32 %v369
      %vm377 = vmor %vm375, %vm376
      %v378 = vsel %vm377, %v369, %v374
      %v379 = vrsqrt.pop %v366
      %v380 = vmul.f32 %v379, %v366
      %v381 = vmul.f32 %v380, %v379
      %v382 = vmul.f32 0.5, %v381
      %v383 = vsub.f32 1.5, %v382
      %v384 = vmul.f32 %v379, %v383
      %vm385 = vweird.f32 %v366
      %vm386 = vweird.f32 %v379
      %vm387 = vmor %vm385, %vm386
      %v388 = vsel %vm387, %v379, %v384
      %v389 = vrsqrt.pop %v367
      %v390 = vmul.f32 %v389, %v367
      %v391 = vmul.f32 %v390, %v389
      %v392 = vmul.f32 0.5, %v391
      %v393 = vsub.f32 1.5, %v392
      %v394 = vmul.f32 %v389, %v393
      %vm395 = vweird.f32 %v367
      %vm396 = vweird.f32 %v389
      %vm397 = vmor %vm395, %vm396
      %v398 = vsel %vm397, %v389, %v394
      %v399 = vrsqrt.pop %v368
      %v400 = vmul.f32 %v399, %v368
      %v401 = vmul.f32 %v400, %v399
      %v402 = vmul.f32 0.5, %v401
      %v403 = vsub.f32 1.5, %v402
      %v404 = vmul.f32 %v399, %v403
      %vm405 = vweird.f32 %v368
      %vm406 = vweird.f32 %v399
      %vm407 = vmor %vm405, %vm406
      %v408 = vsel %vm407, %v399, %v404
      %v409 = vld [vmem:[%s2] sm:$0xf]
      %vm410 = vcmask 31744
      %v412 = vsel %vm410, %v378, 0
      %v415 = vsel %vm410, %v388, 0
      %v418 = vsel %vm410, %v398, 0
      %v421 = vsel %vm410, %v408, 0
      %vm423 = vcmask 1043456
      %v425 = vsel %vm423, %v409, 0
      %427 = vmatpush.msra.mxu0 0.0
      %428 = vmatpush.msra.mxu0 0.0
      %429 = vmatpush.msra.mxu0 0.0
      %430 = vmatpush.msra.mxu0 0.0
      %431 = vmatpush.msra.mxu0 0.0
      %432 = vmatpush.msra.mxu0 0.0
      %433 = vmatpush.msra.mxu0 0.0
      %434 = vmatpush.msra.mxu0 0.0
      %435 = vmatpush.msra.mxu0 0.0
      %436 = vmatpush.msra.mxu0 0.0
      %437 = vmatpush.msra.mxu0 0.0
      %438 = vmatpush.msra.mxu0 0.0
      %439 = vmatpush.msra.mxu0 0.0
      %440 = vmatpush.msra.mxu0 0.0
      %441 = vmatpush.msra.mxu0 0.0
      %442 = vmatpush.msra.mxu0 %v425
      %443 = vmatmul.f32.gmra.mxu0 %v412
      %v444 = vpop.f32.mrf.mxu0
      %v445 = vadd.f32 0.0, %v444
      %446 = vmatmul.f32.gmra.mxu0 %v415
      %v447 = vpop.f32.mrf.mxu0
      %v448 = vadd.f32 0.0, %v447
      %449 = vmatmul.f32.gmra.mxu0 %v418
      %v450 = vpop.f32.mrf.mxu0
      %v451 = vadd.f32 0.0, %v450
      %452 = vmatmul.f32.gmra.mxu0 %v421
      %v453 = vpop.f32.mrf.mxu0
      %v454 = vadd.f32 0.0, %v453
      %455 = vdwg.mxu0
      %v456 = vmul.f32 %v256, %v445
      %v457 = vmul.f32 %v257, %v448
      %v458 = vmul.f32 %v258, %v451
      %v459 = vmul.f32 %v259, %v454
      %v460 = vpack.c.bf16 %v457, %v456
      %v461 = vpack.c.bf16 %v459, %v458
      %v462 = vld [vmem:[%s3] sm:$0xf]
      %v463 = vld [vmem:[%s3 + $0x4] sm:$0xf]
      %v466 = vunpack.c.l.b16 %v462
      %v467 = vunpack.c.l.b16 %v463
      %v468 = vpack.c.b16 %v467, %v466
      %v471 = vsel %vm262, %v460, 0
      %v474 = vsel %vm262, %v461, 0
      %476 = vmatpush.bf16.msra.mxu0 0
      %477 = vmatpush.bf16.msra.mxu0 0
      %478 = vmatpush.bf16.msra.mxu0 0
      %479 = vmatpush.bf16.msra.mxu0 0
      %480 = vmatpush.bf16.msra.mxu0 0
      %481 = vmatpush.bf16.msra.mxu0 0
      %482 = vmatpush.bf16.msra.mxu0 0
      %483 = vmatpush.bf16.msra.mxu0 %v468
      %484 = vmatmul.bf16.gmra.mxu0 %v471
      %v485 = vpop.f32.mrf.mxu0
      %v486 = vadd.f32 0.0, %v485
      %v487 = vpop.f32.mrf.mxu0
      %v488 = vadd.f32 0.0, %v487
      %489 = vmatmul.bf16.gmra.mxu0 %v474
      %v490 = vpop.f32.mrf.mxu0
      %v491 = vadd.f32 0.0, %v490
      %v492 = vpop.f32.mrf.mxu0
      %v493 = vadd.f32 0.0, %v492
      %494 = vdwg.mxu0
      %v495 = vmul.f32 %v349, %v378
      %v496 = vmul.f32 %v350, %v388
      %v497 = vmul.f32 %v351, %v398
      %v498 = vmul.f32 %v352, %v408
      %v499 = vld [vmem:[%s4] sm:$0xf]
      %v501 = vsel %vm410, %v495, 0
      %v504 = vsel %vm410, %v496, 0
      %v507 = vsel %vm410, %v497, 0
      %v510 = vsel %vm410, %v498, 0
      %v513 = vsel %vm423, %v499, 0
      %515 = vmatpush.msra.mxu0 0.0
      %516 = vmatpush.msra.mxu0 0.0
      %517 = vmatpush.msra.mxu0 0.0
      %518 = vmatpush.msra.mxu0 0.0
      %519 = vmatpush.msra.mxu0 0.0
      %520 = vmatpush.msra.mxu0 0.0
      %521 = vmatpush.msra.mxu0 0.0
      %522 = vmatpush.msra.mxu0 0.0
      %523 = vmatpush.msra.mxu0 0.0
      %524 = vmatpush.msra.mxu0 0.0
      %525 = vmatpush.msra.mxu0 0.0
      %526 = vmatpush.msra.mxu0 0.0
      %527 = vmatpush.msra.mxu0 0.0
      %528 = vmatpush.msra.mxu0 0.0
      %529 = vmatpush.msra.mxu0 0.0
      %530 = vmatpush.msra.mxu0 %v513
      %531 = vmatmul.f32.gmra.mxu0 %v501
      %v532 = vpop.f32.mrf.mxu0
      %v533 = vadd.f32 0.0, %v532
      %534 = vmatmul.f32.gmra.mxu0 %v504
      %v535 = vpop.f32.mrf.mxu0
      %v536 = vadd.f32 0.0, %v535
      %537 = vmatmul.f32.gmra.mxu0 %v507
      %v538 = vpop.f32.mrf.mxu0
      %v539 = vadd.f32 0.0, %v538
      %540 = vmatmul.f32.gmra.mxu0 %v510
      %v541 = vpop.f32.mrf.mxu0
      %v542 = vadd.f32 0.0, %v541
      %543 = vdwg.mxu0
      %v544 = vsub.f32 %v486, %v533
      %v545 = vsub.f32 %v488, %v536
      %v546 = vsub.f32 %v491, %v539
      %v547 = vsub.f32 %v493, %v542
      %v548 = vld [vmem:[%s5] sm:$0x1]
      %v550 = vperm.slane %v548, 0
      %v552 = vadd.f32 %v544, %v550
      %v553 = vadd.f32 %v545, %v550
      %v554 = vadd.f32 %v546, %v550
      %v555 = vadd.f32 %v547, %v550
      %v556 = vmul.f32 %v552, 0.5
      %v557 = vmul.f32 %v553, 0.5
      %v558 = vmul.f32 %v554, 0.5
      %v559 = vmul.f32 %v555, 0.5
      %v560 = vmul.f32 %v552, 0.70710677
      %v561 = vmul.f32 %v553, 0.70710677
      %v562 = vmul.f32 %v554, 0.70710677
      %v563 = vmul.f32 %v555, 0.70710677
      %v568 = vand.u32 %v560, 2147483648
      %v569 = vand.u32 %v561, 2147483648
      %v570 = vand.u32 %v562, 2147483648
      %v571 = vand.u32 %v563, 2147483648
      %v572 = vand.u32 2147483647, %v560
      %v573 = vand.u32 2147483647, %v561
      %v574 = vand.u32 2147483647, %v562
      %v575 = vand.u32 2147483647, %v563
      %v576 = vmul.f32 %v572, 0.3275911
      %v577 = vmul.f32 %v573, 0.3275911
      %v578 = vmul.f32 %v574, 0.3275911
      %v579 = vmul.f32 %v575, 0.3275911
      %v580 = vadd.f32 %v576, 1.0
      %v581 = vadd.f32 %v577, 1.0
      %v582 = vadd.f32 %v578, 1.0
      %v583 = vadd.f32 %v579, 1.0
      %v584 = vrcp.pop %v580
      %v585 = vrcp.pop %v581
      %v586 = vrcp.pop %v582
      %v587 = vrcp.pop %v583
      %v588 = vmul.f32 %v580, %v584
      %v589 = vmul.f32 %v581, %v585
      %v590 = vmul.f32 %v582, %v586
      %v591 = vmul.f32 %v583, %v587
      %v592 = vsub.f32 2.0, %v588
      %v593 = vsub.f32 2.0, %v589
      %v594 = vsub.f32 2.0, %v590
      %v595 = vsub.f32 2.0, %v591
      %v596 = vmul.f32 %v584, %v592
      %v597 = vmul.f32 %v585, %v593
      %v598 = vmul.f32 %v586, %v594
      %v599 = vmul.f32 %v587, %v595
      %v600 = vmul.f32 %v596, 1.0614054
      %v601 = vmul.f32 %v597, 1.0614054
      %v602 = vmul.f32 %v598, 1.0614054
      %v603 = vmul.f32 %v599, 1.0614054
      %v604 = vadd.f32 %v600, -1.4531521
      %v605 = vadd.f32 %v601, -1.4531521
      %v606 = vadd.f32 %v602, -1.4531521
      %v607 = vadd.f32 %v603, -1.4531521
      %v608 = vmul.f32 %v596, %v604
      %v609 = vmul.f32 %v597, %v605
      %v610 = vmul.f32 %v598, %v606
      %v611 = vmul.f32 %v599, %v607
      %v612 = vadd.f32 %v608, 1.4214138
      %v613 = vadd.f32 %v609, 1.4214138
      %v614 = vadd.f32 %v610, 1.4214138
      %v615 = vadd.f32 %v611, 1.4214138
      %v616 = vmul.f32 %v596, %v612
      %v617 = vmul.f32 %v597, %v613
      %v618 = vmul.f32 %v598, %v614
      %v619 = vmul.f32 %v599, %v615
      %v620 = vadd.f32 %v616, -0.28449672
      %v621 = vadd.f32 %v617, -0.28449672
      %v622 = vadd.f32 %v618, -0.28449672
      %v623 = vadd.f32 %v619, -0.28449672
      %v624 = vmul.f32 %v596, %v620
      %v625 = vmul.f32 %v597, %v621
      %v626 = vmul.f32 %v598, %v622
      %v627 = vmul.f32 %v599, %v623
      %v628 = vadd.f32 %v624, 0.2548296
      %v629 = vadd.f32 %v625, 0.2548296
      %v630 = vadd.f32 %v626, 0.2548296
      %v631 = vadd.f32 %v627, 0.2548296
      %v632 = vmul.f32 %v596, %v628
      %v633 = vmul.f32 %v597, %v629
      %v634 = vmul.f32 %v598, %v630
      %v635 = vmul.f32 %v599, %v631
      %v636 = vsub.f32 0.0, %v572
      %v637 = vsub.f32 0.0, %v573
      %v638 = vsub.f32 0.0, %v574
      %v639 = vsub.f32 0.0, %v575
      %v640 = vmul.f32 %v636, %v572
      %v641 = vmul.f32 %v637, %v573
      %v642 = vmul.f32 %v638, %v574
      %v643 = vmul.f32 %v639, %v575
      %v644 = vmul.f32 %v640, 1.442695
      %v645 = vpow.pop %v644
      %v646 = vmul.f32 %v641, 1.442695
      %v647 = vpow.pop %v646
      %v648 = vmul.f32 %v642, 1.442695
      %v649 = vpow.pop %v648
      %v650 = vmul.f32 %v643, 1.442695
      %v651 = vpow.pop %v650
      %v652 = vmul.f32 %v632, %v645
      %v653 = vmul.f32 %v633, %v647
      %v654 = vmul.f32 %v634, %v649
      %v655 = vmul.f32 %v635, %v651
      %v656 = vsub.f32 1.0, %v652
      %v657 = vsub.f32 1.0, %v653
      %v658 = vsub.f32 1.0, %v654
      %v659 = vsub.f32 1.0, %v655
      %v664 = vor.u32 %v656, %v568
      %v665 = vor.u32 %v657, %v569
      %v666 = vor.u32 %v658, %v570
      %v667 = vor.u32 %v659, %v571
      %v672 = vadd.f32 %v664, 1.0
      %v673 = vadd.f32 %v665, 1.0
      %v674 = vadd.f32 %v666, 1.0
      %v675 = vadd.f32 %v667, 1.0
      %v676 = vmul.f32 %v556, %v672
      %v677 = vmul.f32 %v557, %v673
      %v678 = vmul.f32 %v558, %v674
      %v679 = vmul.f32 %v559, %v675
      %vm680 = vcmask 64512
      %681 = vst.msk [vmem:[%s253] sm:$0xff] %vm680, %v676
      %682 = vst.msk [vmem:[%s253 + $0x8] sm:$0xff] %vm680, %v677
      %683 = vst.msk [vmem:[%s253 + $0x10] sm:$0xff] %vm680, %v678
      %684 = vst.msk [vmem:[%s253 + $0x18] sm:$0xff] %vm680, %v679
      %s685 = smul.u32 4, %s17
      %p686 = scmp.lt.s32.totalorder %s685, 15
      %s687 = scalar_select %p686, %s685, 15
      %s688 = smul.addr %s687, 8
      %s689 = scalar_lea.vmem %s6, %s688
      // Predicated region
      $region45: #{tpu_custom_call.1} parent=43 // pred_check
        %p690 = pneg %p166
      $region46: #{tpu_custom_call.1} parent=43 // pred_check_branch
        %692 = sbr.rel (%p690) target = $region48
      $region47: #{tpu_custom_call.1} parent=43 // pred_region
        %s693 = smul.u32 4, %s17
      $region48: #{tpu_custom_call.1} parent=43 // pred_fallthru
        _
    $region44: #{tpu_custom_call.1} parent=5 // pred_fallthru
      _
    %p694 = scmp.le.s32.totalorder 2, %s12
    // Predicated region
    $region49: #{tpu_custom_call.1} parent=5 // pred_check
      %p695 = pneg %p694
    $region50: #{tpu_custom_call.1} parent=5 // pred_check_branch
      %697 = sbr.rel (%p695) target = $region52
    $region51: #{tpu_custom_call.1} parent=5 // pred_region
      %s698 = ssub.s32 %s12, 2
      // Predicated region
      $region53: #{tpu_custom_call.1} parent=51 // pred_check
        %p699 = pneg %p172
      $region54: #{tpu_custom_call.1} parent=51 // pred_check_branch
        %701 = sbr.rel (%p699) target = $region56
      $region55: #{tpu_custom_call.1} parent=51 // pred_region
        %s702 = smul.u32 4, %s18
        %p703 = scmp.lt.s32.totalorder %s702, 15
        %s704 = scalar_select %p703, %s702, 15
        %s705 = smul.addr %s704, 8
        %s706 = scalar_lea.vmem %s6, %s705
      $region56: #{tpu_custom_call.1} parent=51 // pred_fallthru
        _
    $region52: #{tpu_custom_call.1} parent=5 // pred_fallthru
      _
  $region6: #{tpu_custom_call.1} parent=0 // loop_footer
    %s16 = sadd.s32 1, %s12
  $region7: #{tpu_custom_call.1} parent=0 // loop_footer_branch
    %11 = sbr.rel target = $region3
  $region8: #{tpu_custom_call.1} parent=0 // loop_exit
    _

</llo_original>
